<compile_context>
chip_gen: v5e
topology: v5e:2x2
jax: 0.10.0
libtpu: 0.0.40
codegen_flags: <defaults>
</compile_context>

<pallas_src>
import jax
import jax.numpy as jnp
from jax.experimental import pallas as pl
from jax.experimental.pallas import tpu as pltpu

C_IN = 64
C_OUT = 128
KH = KW = 3
STRIDE = 2
PAD = 1


def _conv_mm_kernel(p_ref, w_ref, o_ref):
    """p_ref: (tm, 9*Cin), w_ref: (9*Cin, Cout), o_ref: (tm, Cout)."""
    o_ref[...] = jnp.dot(
        p_ref[...], w_ref[...], preferred_element_type=jnp.float32
    ).astype(o_ref.dtype)


def _pick_tm(M):
    """Largest tile (<=2048, mult. of 8) dividing M, preferring >=2 grid steps (v7x 2-TC)."""
    candidates = (2048, 1024, 512, 256, 128, 64, 32, 16, 8)
    for tm in candidates:
        if M % tm == 0 and (M // tm) >= 2:
            return tm
    for tm in candidates:
        if M % tm == 0:
            return tm
    return M  # last resort: single full-M tile (M not a multiple of 8)


def _pallas_conv_matmul(patches, w_mat, tm):
    """patches: (M, 9*Cin), w_mat: (9*Cin, Cout) -> (M, Cout)."""
    M, K = patches.shape
    cout = w_mat.shape[-1]
    grid = (M // tm,)
    return pl.pallas_call(
        _conv_mm_kernel,
        out_shape=jax.ShapeDtypeStruct((M, cout), patches.dtype),
        grid_spec=pltpu.PrefetchScalarGridSpec(
            num_scalar_prefetch=0,
            grid=grid,
            in_specs=[
                pl.BlockSpec((tm, K), lambda i: (i, 0)),
                # constant index_map: weights (~147 KB bf16) stay resident in VMEM.
                pl.BlockSpec((K, cout), lambda i: (0, 0)),
            ],
            out_specs=pl.BlockSpec((tm, cout), lambda i: (i, 0)),
        ),
        compiler_params=pltpu.CompilerParams(
            dimension_semantics=("parallel",)
        ),
    )(patches, w_mat)


@jax.jit
def simple_net_forward(x_nchw, w_oihw):
    """Forward pass of SimpleNet.

    x_nchw: (N, 64, H, W) bf16
    w_oihw: (128, 64, 3, 3) bf16  (PyTorch Conv2d weight layout)
    returns: (N, 128 * OH * OW) bf16, identical to torch.flatten(conv(x), 1).
    """
    N, cin, H, W = x_nchw.shape
    OH = (H + 2 * PAD - KH) // STRIDE + 1
    OW = (W + 2 * PAD - KW) // STRIDE + 1

    # --- glue: NCHW -> NHWC, pad, fold the 9 taps into the contraction dim ---
    x_nhwc = jnp.transpose(x_nchw, (0, 2, 3, 1))
    xp = jnp.pad(x_nhwc, ((0, 0), (PAD, PAD), (PAD, PAD), (0, 0)))
    taps = []
    for kh in range(KH):
        for kw in range(KW):
            taps.append(
                xp[:, kh:kh + STRIDE * OH:STRIDE, kw:kw + STRIDE * OW:STRIDE, :]
            )
    # (N, OH, OW, 9*Cin) -> (M, 576): contraction index = (kh*KW + kw)*Cin + c
    patches = jnp.concatenate(taps, axis=-1).reshape(N * OH * OW, KH * KW * cin)

    # weight: (Cout, Cin, KH, KW) -> (KH, KW, Cin, Cout) -> (9*Cin, Cout), same ordering
    w_mat = jnp.transpose(w_oihw, (2, 3, 1, 0)).reshape(KH * KW * cin, C_OUT)

    # --- hot path: single K=576 MXU matmul per M-tile ---
    M = N * OH * OW
    tm = _pick_tm(M)
    y = _pallas_conv_matmul(patches, w_mat, tm)  # (M, Cout)

    # --- glue: NHWC result -> NCHW -> flatten(start_dim=1) ---
    y = y.reshape(N, OH, OW, C_OUT)
    y = jnp.transpose(y, (0, 3, 1, 2))  # (N, Cout, OH, OW)
    return y.reshape(N, C_OUT * OH * OW)


if __name__ == "__main__":
    key = jax.random.PRNGKey(0)
    kx, kw = jax.random.split(key)

    # small shapes consistent with the module: batch=2, Cin=64, 16x16 spatial
    N, H, W = 2, 16, 16
    x = jax.random.uniform(kx, (N, C_IN, H, W), dtype=jnp.float32).astype(jnp.bfloat16)
    # deterministic conv weight, Kaiming-uniform-ish scale
    bound = (1.0 / (C_IN * KH * KW)) ** 0.5
    w = jax.random.uniform(
        kw, (C_OUT, C_IN, KH, KW), minval=-bound, maxval=bound, dtype=jnp.float32
    ).astype(jnp.bfloat16)

    out = simple_net_forward(x, w)
    out = jax.block_until_ready(out)

    # sanity check against XLA's conv (f32 reference)
    ref = jax.lax.conv_general_dilated(
        x.astype(jnp.float32),
        w.astype(jnp.float32),
        window_strides=(STRIDE, STRIDE),
        padding=((PAD, PAD), (PAD, PAD)),
        dimension_numbers=("NCHW", "OIHW", "NCHW"),
    )
    ref_flat = ref.reshape(N, -1)
    assert out.shape == ref_flat.shape, (out.shape, ref_flat.shape)
    err = jnp.max(jnp.abs(out.astype(jnp.float32) - ref_flat))
    assert float(err) < 5e-2, f"max abs error too large: {float(err)}"

    print("KERNEL_OK")
</pallas_src>

<mosaic_0001>
module attributes {stable_mosaic.version = 11 : i64} {
  func.func @_conv_mm_kernel(%arg0: i32, %arg1: memref<64x576xbf16, #tpu.memory_space<vmem>>, %arg2: memref<576x128xbf16, #tpu.memory_space<vmem>>, %arg3: memref<64x128xbf16, #tpu.memory_space<vmem>>) attributes {dimension_semantics = [#tpu.dimension_semantics<parallel>], iteration_bounds = array<i64: 2>, scalar_prefetch = 0 : i64, scratch_operands = 0 : i64, tpu.core_type = #tpu.core_type<tc>, window_params = [{transform_indices = @transform_0, window_bounds = array<i64: 64, 576>}, {pipeline_mode = #tpu.pipeline_mode<synchronous>, transform_indices = @transform_1, window_bounds = array<i64: 576, 128>}, {transform_indices = @transform_2, window_bounds = array<i64: 64, 128>}]} {
    %c0 = arith.constant 0 : index
    %c0_0 = arith.constant 0 : index
    %0 = vector.load %arg1[%c0, %c0_0] : memref<64x576xbf16, #tpu.memory_space<vmem>>, vector<64x576xbf16>
    %c0_1 = arith.constant 0 : index
    %c0_2 = arith.constant 0 : index
    %1 = vector.load %arg2[%c0_1, %c0_2] : memref<576x128xbf16, #tpu.memory_space<vmem>>, vector<576x128xbf16>
    %cst = arith.constant dense<0.000000e+00> : vector<64x128xf32>
    %2 = tpu.matmul %0, %1, %cst {dimension_numbers = #tpu.dot_dimension_numbers<[1], [0], [0], [1], [0, 0, 1, 1], [], []>} : vector<64x576xbf16>, vector<576x128xbf16>, vector<64x128xf32> -> vector<64x128xf32>
    %3 = arith.truncf %2 : vector<64x128xf32> to vector<64x128xbf16>
    %c0_3 = arith.constant 0 : index
    %c0_4 = arith.constant 0 : index
    %4 = vector.load %arg3[%c0_3, %c0_4] : memref<64x128xbf16, #tpu.memory_space<vmem>>, vector<64x128xbf16>
    tpu.vector_store %arg3[%c0_3, %c0_4], %3 {strides = array<i32>} : memref<64x128xbf16, #tpu.memory_space<vmem>>, vector<64x128xbf16>,
    return
  }
  func.func @transform_0(%arg0: i32) -> (i32, i32) {
    %c0_i32 = arith.constant 0 : i32
    %c0_i32_0 = arith.constant 0 : i32
    return %arg0, %c0_i32 : i32, i32
  }
  func.func @transform_1(%arg0: i32) -> (i32, i32) {
    %c0_i32 = arith.constant 0 : i32
    %c0_i32_0 = arith.constant 0 : i32
    %c0_i32_1 = arith.constant 0 : i32
    return %c0_i32, %c0_i32_0 : i32, i32
  }
  func.func @transform_2(%arg0: i32) -> (i32, i32) {
    %c0_i32 = arith.constant 0 : i32
    %c0_i32_0 = arith.constant 0 : i32
    return %arg0, %c0_i32 : i32, i32
  }
}

</mosaic_0001>

<llo_original>
// kernel: simple_net_forward.1
$region0: #{simple_net_forward.1}
  #allocation0 [shape = 'u32[]', space=smem, size = 0x4, offset = 0x4, fixed_abs, tag = 'smem constant byte address 0x4 - core index']
  #allocation1 [shape = 'u32[72,128]{1,0:T(1,128)}', space=vmem, size = 0x9000, scoped, tag = 'internal scratch']
  %s0 = inlined_call_operand.vmem [shape: bf16[128,576], index: 0, kind: input, shape index: {}]
  %s1 = inlined_call_operand.vmem [shape: bf16[576,128], index: 1, kind: input, shape index: {}]
  %s2 = inlined_call_operand.vmem [shape: bf16[128,128], index: 2, kind: output, shape index: {}]
  %s3 = sld [smem:[#allocation0]]
  $region41: #{simple_net_forward.1} parent=0
    _
  %s5 = ssub.s32 1, %s3
  %s6 = scalar_select 0, %s5, %s3
  loop: start=0, step=1, limit=4
  $region2: #{simple_net_forward.1} parent=0 // loop_pre_header
    _
  $region3: #{simple_net_forward.1} parent=0 // loop_header
    %s8 = sphi 0, %s12
    %p9 = scmp.ge.s32.totalorder %s8, 4
    %s18 = sphi 0, %s20
    %s21 = sphi 0, %s18
    %s22 = sphi 0, %s21
    %s38 = sphi 0, %s22
    %s42 = sphi 0, %s42
    %s44 = sphi 0, %s42
    %s45 = sphi 0, %s44
    %s59 = sphi 0, %s45
    %s65 = sphi 0, %s67
    %s68 = sphi 0, %s65
    %s69 = sphi 0, %s68
    %s85 = sphi 0, %s69
  $region4: #{simple_net_forward.1} parent=0 // loop_header_branch
    %11 = sbr.rel (%p9) target = $region8
  $region5: #{simple_net_forward.1} parent=0 // loop_body
    %s13 = ssub.s32 %s8, 1
    %s14 = ssub.s32 %s8, 2
    %s15 = sadd.s32 %s8, 1
    %s16 = ssub.s32 %s8, %s15
    %p17 = scmp.eq.s32.totalorder %s16, 0
    %s19 = sadd.s32 %s18, 1
    %s20 = scalar_select %p17, %s18, %s19
    %p23 = pneg %p17
    %p24 = scmp.eq.s32.totalorder %s8, 1
    %p25 = por %p23, %p24
    %p26 = scmp.ne.s32.totalorder %s18, %s21
    %p27 = scmp.eq.s32.totalorder %s8, 0
    %p28 = por %p26, %p27
    %p29 = scmp.ne.s32.totalorder %s18, %s21
    %p30 = scmp.eq.s32.totalorder %s13, 1
    %p31 = por %p29, %p30
    %p32 = scmp.ne.s32.totalorder %s21, %s22
    %p33 = scmp.eq.s32.totalorder %s13, 0
    %p34 = por %p32, %p33
    %p35 = scmp.ne.s32.totalorder %s21, %s22
    %p36 = scmp.eq.s32.totalorder %s14, 1
    %p37 = por %p35, %p36
    %p39 = scmp.ne.s32.totalorder %s22, %s38
    %p40 = scmp.eq.s32.totalorder %s14, 0
    %p41 = por %p39, %p40
    %s43 = sadd.s32 %s42, 1
    %p46 = scmp.eq.s32.totalorder %s8, 1
    %p47 = scmp.ne.s32.totalorder %s42, %s44
    %p48 = scmp.eq.s32.totalorder %s8, 0
    %p49 = por %p47, %p48
    %p50 = scmp.ne.s32.totalorder %s42, %s44
    %p51 = scmp.eq.s32.totalorder %s13, 1
    %p52 = por %p50, %p51
    %p53 = scmp.ne.s32.totalorder %s44, %s45
    %p54 = scmp.eq.s32.totalorder %s13, 0
    %p55 = por %p53, %p54
    %p56 = scmp.ne.s32.totalorder %s44, %s45
    %p57 = scmp.eq.s32.totalorder %s14, 1
    %p58 = por %p56, %p57
    %p60 = scmp.ne.s32.totalorder %s45, %s59
    %p61 = scmp.eq.s32.totalorder %s14, 0
    %p62 = por %p60, %p61
    %s63 = ssub.s32 %s8, %s15
    %p64 = scmp.eq.s32.totalorder %s63, 0
    %s66 = sadd.s32 %s65, 1
    %s67 = scalar_select %p64, %s65, %s66
    %p70 = pneg %p64
    %p71 = scmp.eq.s32.totalorder %s8, 1
    %p72 = por %p70, %p71
    %p73 = scmp.ne.s32.totalorder %s65, %s68
    %p74 = scmp.eq.s32.totalorder %s8, 0
    %p75 = por %p73, %p74
    %p76 = scmp.ne.s32.totalorder %s65, %s68
    %p77 = scmp.eq.s32.totalorder %s13, 1
    %p78 = por %p76, %p77
    %p79 = scmp.ne.s32.totalorder %s68, %s69
    %p80 = scmp.eq.s32.totalorder %s13, 0
    %p81 = por %p79, %p80
    %p82 = scmp.ne.s32.totalorder %s68, %s69
    %p83 = scmp.eq.s32.totalorder %s14, 1
    %p84 = por %p82, %p83
    %p86 = scmp.ne.s32.totalorder %s69, %s85
    %p87 = scmp.eq.s32.totalorder %s14, 0
    %p88 = por %p86, %p87
    %p89 = scmp.le.s32.totalorder 1, %s8
    %p90 = scmp.lt.s32.totalorder %s8, 3
    %p91 = pnand %p89, %p90
    %p92 = pneg %p91
    // Predicated region
    $region9: #{simple_net_forward.1} parent=5 // pred_check
      _
    $region10: #{simple_net_forward.1} parent=5 // pred_check_branch
      %94 = sbr.rel (%p91) target = $region12
    $region11: #{simple_net_forward.1} parent=5 // pred_region
      %s95 = ssub.s32 %s8, 1
      // Predicated region
      $region13: #{simple_net_forward.1} parent=11 // pred_check
        %p96 = pneg %p55
      $region14: #{simple_net_forward.1} parent=11 // pred_check_branch
        %98 = sbr.rel (%p96) target = $region16
      $region15: #{simple_net_forward.1} parent=11 // pred_region
        _
      $region16: #{simple_net_forward.1} parent=11 // pred_fallthru
        _
    $region12: #{simple_net_forward.1} parent=5 // pred_fallthru
      _
    %p99 = scmp.lt.s32.totalorder %s8, 2
    // Predicated region
    $region17: #{simple_net_forward.1} parent=5 // pred_check
      %p100 = pneg %p99
    $region18: #{simple_net_forward.1} parent=5 // pred_check_branch
      %102 = sbr.rel (%p100) target = $region20
    $region19: #{simple_net_forward.1} parent=5 // pred_region
      // Predicated region
      $region21: #{simple_net_forward.1} parent=19 // pred_check
        %p103 = pneg %p28
      $region22: #{simple_net_forward.1} parent=19 // pred_check_branch
        %105 = sbr.rel (%p103) target = $region24
      $region23: #{simple_net_forward.1} parent=19 // pred_region
        %s106 = smul.u32 8, %s8
        %p107 = scmp.lt.s32.totalorder %s106, 15
        %s108 = scalar_select %p107, %s106, 15
        %s109 = smul.addr %s108, 5
        %s110 = smul.addr %s109, 4
        %s111 = scalar_lea.vmem %s0, %s110
        %s112 = smul.u32 8, %s8
      $region24: #{simple_net_forward.1} parent=19 // pred_fallthru
        _
    $region20: #{simple_net_forward.1} parent=5 // pred_fallthru
      _
    %p113 = scmp.le.s32.totalorder 1, %s8
    %p114 = scmp.lt.s32.totalorder %s8, 3
    %p115 = pnand %p113, %p114
    %p116 = pneg %p115
    // Predicated region
    $region25: #{simple_net_forward.1} parent=5 // pred_check
      _
    $region26: #{simple_net_forward.1} parent=5 // pred_check_branch
      %118 = sbr.rel (%p115) target = $region28
    $region27: #{simple_net_forward.1} parent=5 // pred_region
      %s119 = ssub.s32 %s8, 1
      %s120 = smul.u32 8, %s13
      %p121 = scmp.lt.s32.totalorder %s120, 15
      %s122 = scalar_select %p121, %s120, 15
      %s123 = smul.addr %s122, 5
      %s124 = smul.addr %s123, 4
      %s125 = scalar_lea.vmem %s0, %s124
      %p126 = pneg %p34
      %p127 = pneg %p31
      %p128 = pneg %p55
      %p129 = pneg %p52
      %p130 = pneg %p81
      %p131 = pneg %p78
      %s132 = smul.u32 8, %s13
      %p133 = scmp.lt.s32.totalorder %s132, 15
      %s134 = scalar_select %p133, %s132, 15
      %s135 = smul.addr %s134, 4
      %s136 = scalar_lea.vmem %s2, %s135
      %s137 = smul.u32 8, %s13
      %p138 = scmp.lt.s32.totalorder %s137, 15
      %s139 = scalar_select %p138, %s137, 15
      %s140 = smul.addr %s139, 5
      %s141 = smul.addr %s140, 4
      %s142 = scalar_lea.vmem %s0, %s141
      %s143 = smul.u32 8, %s13
      %s144 = smul.u32 8, %s13
      %p145 = scmp.lt.s32.totalorder %s144, 15
      %s146 = scalar_select %p145, %s144, 15
      %s147 = smul.addr %s146, 4
      %s148 = scalar_lea.vmem %s2, %s147
      %s149 = smul.u32 8, %s13
      %v151 = vld [vmem:[%s142] sm:$0xff]
      %v152 = vld [vmem:[%s142 + $0x8] sm:$0xff]
      %v153 = vld [vmem:[%s142 + $0x10] sm:$0xf]
      %v154 = vld [vmem:[%s142 + $0x14] sm:$0xff]
      %v155 = vld [vmem:[%s142 + $0x1c] sm:$0xff]
      %v156 = vld [vmem:[%s142 + $0x24] sm:$0xf]
      %v157 = vld [vmem:[%s142 + $0x28] sm:$0xff]
      %v158 = vld [vmem:[%s142 + $0x30] sm:$0xff]
      %v159 = vld [vmem:[%s142 + $0x38] sm:$0xf]
      %v160 = vld [vmem:[%s142 + $0x3c] sm:$0xff]
      %v161 = vld [vmem:[%s142 + $0x44] sm:$0xff]
      %v162 = vld [vmem:[%s142 + $0x4c] sm:$0xf]
      %v163 = vld [vmem:[%s142 + $0x50] sm:$0xff]
      %v164 = vld [vmem:[%s142 + $0x58] sm:$0xff]
      %v165 = vld [vmem:[%s142 + $0x60] sm:$0xf]
      %v166 = vld [vmem:[%s142 + $0x64] sm:$0xff]
      %v167 = vld [vmem:[%s142 + $0x6c] sm:$0xff]
      %v168 = vld [vmem:[%s142 + $0x74] sm:$0xf]
      %v169 = vld [vmem:[%s142 + $0x78] sm:$0xff]
      %v170 = vld [vmem:[%s142 + $0x80] sm:$0xff]
      %v171 = vld [vmem:[%s142 + $0x88] sm:$0xf]
      %v172 = vld [vmem:[%s142 + $0x8c] sm:$0xff]
      %v173 = vld [vmem:[%s142 + $0x94] sm:$0xff]
      %v174 = vld [vmem:[%s142 + $0x9c] sm:$0xf]
      %v175 = vld [vmem:[%s1] sm:$0xf]
      %v176 = vld [vmem:[%s1 + $0x4] sm:$0xf]
      %v177 = vld [vmem:[%s1 + $0x8] sm:$0xf]
      %v178 = vld [vmem:[%s1 + $0xc] sm:$0xf]
      %v179 = vld [vmem:[%s1 + $0x10] sm:$0xf]
      %v180 = vld [vmem:[%s1 + $0x14] sm:$0xf]
      %v181 = vld [vmem:[%s1 + $0x18] sm:$0xf]
      %v182 = vld [vmem:[%s1 + $0x1c] sm:$0xf]
      %v183 = vld [vmem:[%s1 + $0x20] sm:$0xf]
      %v184 = vld [vmem:[%s1 + $0x24] sm:$0xf]
      %v185 = vld [vmem:[%s1 + $0x28] sm:$0xf]
      %v186 = vld [vmem:[%s1 + $0x2c] sm:$0xf]
      %v187 = vld [vmem:[%s1 + $0x30] sm:$0xf]
      %v188 = vld [vmem:[%s1 + $0x34] sm:$0xf]
      %v189 = vld [vmem:[%s1 + $0x38] sm:$0xf]
      %v190 = vld [vmem:[%s1 + $0x3c] sm:$0xf]
      %v191 = vld [vmem:[%s1 + $0x40] sm:$0xf]
      %v192 = vld [vmem:[%s1 + $0x44] sm:$0xf]
      %v193 = vld [vmem:[%s1 + $0x48] sm:$0xf]
      %v194 = vld [vmem:[%s1 + $0x4c] sm:$0xf]
      %v195 = vld [vmem:[%s1 + $0x50] sm:$0xf]
      %v196 = vld [vmem:[%s1 + $0x54] sm:$0xf]
      %v197 = vld [vmem:[%s1 + $0x58] sm:$0xf]
      %v198 = vld [vmem:[%s1 + $0x5c] sm:$0xf]
      %v199 = vld [vmem:[%s1 + $0x60] sm:$0xf]
      %v200 = vld [vmem:[%s1 + $0x64] sm:$0xf]
      %v201 = vld [vmem:[%s1 + $0x68] sm:$0xf]
      %v202 = vld [vmem:[%s1 + $0x6c] sm:$0xf]
      %v203 = vld [vmem:[%s1 + $0x70] sm:$0xf]
      %v204 = vld [vmem:[%s1 + $0x74] sm:$0xf]
      %v205 = vld [vmem:[%s1 + $0x78] sm:$0xf]
      %v206 = vld [vmem:[%s1 + $0x7c] sm:$0xf]
      %v207 = vld [vmem:[%s1 + $0x80] sm:$0xf]
      %v208 = vld [vmem:[%s1 + $0x84] sm:$0xf]
      %v209 = vld [vmem:[%s1 + $0x88] sm:$0xf]
      %v210 = vld [vmem:[%s1 + $0x8c] sm:$0xf]
      %v211 = vld [vmem:[%s1 + $0x90] sm:$0xf]
      %v212 = vld [vmem:[%s1 + $0x94] sm:$0xf]
      %v213 = vld [vmem:[%s1 + $0x98] sm:$0xf]
      %v214 = vld [vmem:[%s1 + $0x9c] sm:$0xf]
      %v215 = vld [vmem:[%s1 + $0xa0] sm:$0xf]
      %v216 = vld [vmem:[%s1 + $0xa4] sm:$0xf]
      %v217 = vld [vmem:[%s1 + $0xa8] sm:$0xf]
      %v218 = vld [vmem:[%s1 + $0xac] sm:$0xf]
      %v219 = vld [vmem:[%s1 + $0xb0] sm:$0xf]
      %v220 = vld [vmem:[%s1 + $0xb4] sm:$0xf]
      %v221 = vld [vmem:[%s1 + $0xb8] sm:$0xf]
      %v222 = vld [vmem:[%s1 + $0xbc] sm:$0xf]
      %v223 = vld [vmem:[%s1 + $0xc0] sm:$0xf]
      %v224 = vld [vmem:[%s1 + $0xc4] sm:$0xf]
      %v225 = vld [vmem:[%s1 + $0xc8] sm:$0xf]
      %v226 = vld [vmem:[%s1 + $0xcc] sm:$0xf]
      %v227 = vld [vmem:[%s1 + $0xd0] sm:$0xf]
      %v228 = vld [vmem:[%s1 + $0xd4] sm:$0xf]
      %v229 = vld [vmem:[%s1 + $0xd8] sm:$0xf]
      %v230 = vld [vmem:[%s1 + $0xdc] sm:$0xf]
      %v231 = vld [vmem:[%s1 + $0xe0] sm:$0xf]
      %v232 = vld [vmem:[%s1 + $0xe4] sm:$0xf]
      %v233 = vld [vmem:[%s1 + $0xe8] sm:$0xf]
      %v234 = vld [vmem:[%s1 + $0xec] sm:$0xf]
      %v235 = vld [vmem:[%s1 + $0xf0] sm:$0xf]
      %v236 = vld [vmem:[%s1 + $0xf4] sm:$0xf]
      %v237 = vld [vmem:[%s1 + $0xf8] sm:$0xf]
      %v238 = vld [vmem:[%s1 + $0xfc] sm:$0xf]
      %v239 = vld [vmem:[%s1 + $0x100] sm:$0xf]
      %v240 = vld [vmem:[%s1 + $0x104] sm:$0xf]
      %v241 = vld [vmem:[%s1 + $0x108] sm:$0xf]
      %v242 = vld [vmem:[%s1 + $0x10c] sm:$0xf]
      %v243 = vld [vmem:[%s1 + $0x110] sm:$0xf]
      %v244 = vld [vmem:[%s1 + $0x114] sm:$0xf]
      %v245 = vld [vmem:[%s1 + $0x118] sm:$0xf]
      %v246 = vld [vmem:[%s1 + $0x11c] sm:$0xf]
      %v271 = vunpack.c.l.b16 %v151
      %v272 = vunpack.c.h.b16 %v151
      %v273 = vunpack.c.l.b16 %v152
      %v274 = vunpack.c.h.b16 %v152
      %v275 = vunpack.c.l.b16 %v153
      %v276 = vunpack.c.l.b16 %v154
      %v277 = vunpack.c.h.b16 %v154
      %v278 = vunpack.c.l.b16 %v155
      %v279 = vunpack.c.h.b16 %v155
      %v280 = vunpack.c.l.b16 %v156
      %v281 = vunpack.c.l.b16 %v157
      %v282 = vunpack.c.h.b16 %v157
      %v283 = vunpack.c.l.b16 %v158
      %v284 = vunpack.c.h.b16 %v158
      %v285 = vunpack.c.l.b16 %v159
      %v286 = vunpack.c.l.b16 %v160
      %v287 = vunpack.c.h.b16 %v160
      %v288 = vunpack.c.l.b16 %v161
      %v289 = vunpack.c.h.b16 %v161
      %v290 = vunpack.c.l.b16 %v162
      %v291 = vunpack.c.l.b16 %v163
      %v292 = vunpack.c.h.b16 %v163
      %v293 = vunpack.c.l.b16 %v164
      %v294 = vunpack.c.h.b16 %v164
      %v295 = vunpack.c.l.b16 %v165
      %v296 = vunpack.c.l.b16 %v166
      %v297 = vunpack.c.h.b16 %v166
      %v298 = vunpack.c.l.b16 %v167
      %v299 = vunpack.c.h.b16 %v167
      %v300 = vunpack.c.l.b16 %v168
      %v301 = vunpack.c.l.b16 %v169
      %v302 = vunpack.c.h.b16 %v169
      %v303 = vunpack.c.l.b16 %v170
      %v304 = vunpack.c.h.b16 %v170
      %v305 = vunpack.c.l.b16 %v171
      %v306 = vunpack.c.l.b16 %v172
      %v307 = vunpack.c.h.b16 %v172
      %v308 = vunpack.c.l.b16 %v173
      %v309 = vunpack.c.h.b16 %v173
      %v310 = vunpack.c.l.b16 %v174
      %v311 = vpack.c.b16 %v276, %v271
      %v312 = vpack.c.b16 %v277, %v272
      %v313 = vpack.c.b16 %v278, %v273
      %v314 = vpack.c.b16 %v279, %v274
      %v315 = vpack.c.b16 %v280, %v275
      %v316 = vpack.c.b16 %v286, %v281
      %v317 = vpack.c.b16 %v287, %v282
      %v318 = vpack.c.b16 %v288, %v283
      %v319 = vpack.c.b16 %v289, %v284
      %v320 = vpack.c.b16 %v290, %v285
      %v321 = vpack.c.b16 %v296, %v291
      %v322 = vpack.c.b16 %v297, %v292
      %v323 = vpack.c.b16 %v298, %v293
      %v324 = vpack.c.b16 %v299, %v294
      %v325 = vpack.c.b16 %v300, %v295
      %v326 = vpack.c.b16 %v306, %v301
      %v327 = vpack.c.b16 %v307, %v302
      %v328 = vpack.c.b16 %v308, %v303
      %v329 = vpack.c.b16 %v309, %v304
      %v330 = vpack.c.b16 %v310, %v305
      %v419 = vunpack.c.l.b16 %v175
      %v420 = vunpack.c.l.b16 %v176
      %v421 = vunpack.c.l.b16 %v177
      %v422 = vunpack.c.l.b16 %v178
      %v423 = vunpack.c.l.b16 %v179
      %v424 = vunpack.c.l.b16 %v180
      %v425 = vunpack.c.l.b16 %v181
      %v426 = vunpack.c.l.b16 %v182
      %v427 = vunpack.c.l.b16 %v183
      %v428 = vunpack.c.l.b16 %v184
      %v429 = vunpack.c.l.b16 %v185
      %v430 = vunpack.c.l.b16 %v186
      %v431 = vunpack.c.l.b16 %v187
      %v432 = vunpack.c.l.b16 %v188
      %v433 = vunpack.c.l.b16 %v189
      %v434 = vunpack.c.l.b16 %v190
      %v435 = vunpack.c.l.b16 %v191
      %v436 = vunpack.c.l.b16 %v192
      %v437 = vunpack.c.l.b16 %v193
      %v438 = vunpack.c.l.b16 %v194
      %v439 = vunpack.c.l.b16 %v195
      %v440 = vunpack.c.l.b16 %v196
      %v441 = vunpack.c.l.b16 %v197
      %v442 = vunpack.c.l.b16 %v198
      %v443 = vunpack.c.l.b16 %v199
      %v444 = vunpack.c.l.b16 %v200
      %v445 = vunpack.c.l.b16 %v201
      %v446 = vunpack.c.l.b16 %v202
      %v447 = vunpack.c.l.b16 %v203
      %v448 = vunpack.c.l.b16 %v204
      %v449 = vunpack.c.l.b16 %v205
      %v450 = vunpack.c.l.b16 %v206
      %v451 = vunpack.c.l.b16 %v207
      %v452 = vunpack.c.l.b16 %v208
      %v453 = vunpack.c.l.b16 %v209
      %v454 = vunpack.c.l.b16 %v210
      %v455 = vunpack.c.l.b16 %v211
      %v456 = vunpack.c.l.b16 %v212
      %v457 = vunpack.c.l.b16 %v213
      %v458 = vunpack.c.l.b16 %v214
      %v459 = vunpack.c.l.b16 %v215
      %v460 = vunpack.c.l.b16 %v216
      %v461 = vunpack.c.l.b16 %v217
      %v462 = vunpack.c.l.b16 %v218
      %v463 = vunpack.c.l.b16 %v219
      %v464 = vunpack.c.l.b16 %v220
      %v465 = vunpack.c.l.b16 %v221
      %v466 = vunpack.c.l.b16 %v222
      %v467 = vunpack.c.l.b16 %v223
      %v468 = vunpack.c.l.b16 %v224
      %v469 = vunpack.c.l.b16 %v225
      %v470 = vunpack.c.l.b16 %v226
      %v471 = vunpack.c.l.b16 %v227
      %v472 = vunpack.c.l.b16 %v228
      %v473 = vunpack.c.l.b16 %v229
      %v474 = vunpack.c.l.b16 %v230
      %v475 = vunpack.c.l.b16 %v231
      %v476 = vunpack.c.l.b16 %v232
      %v477 = vunpack.c.l.b16 %v233
      %v478 = vunpack.c.l.b16 %v234
      %v479 = vunpack.c.l.b16 %v235
      %v480 = vunpack.c.l.b16 %v236
      %v481 = vunpack.c.l.b16 %v237
      %v482 = vunpack.c.l.b16 %v238
      %v483 = vunpack.c.l.b16 %v239
      %v484 = vunpack.c.l.b16 %v240
      %v485 = vunpack.c.l.b16 %v241
      %v486 = vunpack.c.l.b16 %v242
      %v487 = vunpack.c.l.b16 %v243
      %v488 = vunpack.c.l.b16 %v244
      %v489 = vunpack.c.l.b16 %v245
      %v490 = vunpack.c.l.b16 %v246
      %v491 = vpack.c.b16 %v420, %v419
      %v492 = vpack.c.b16 %v422, %v421
      %v493 = vpack.c.b16 %v424, %v423
      %v494 = vpack.c.b16 %v426, %v425
      %v495 = vpack.c.b16 %v428, %v427
      %v496 = vpack.c.b16 %v430, %v429
      %v497 = vpack.c.b16 %v432, %v431
      %v498 = vpack.c.b16 %v434, %v433
      %v499 = vpack.c.b16 %v436, %v435
      %v500 = vpack.c.b16 %v438, %v437
      %v501 = vpack.c.b16 %v440, %v439
      %v502 = vpack.c.b16 %v442, %v441
      %v503 = vpack.c.b16 %v444, %v443
      %v504 = vpack.c.b16 %v446, %v445
      %v505 = vpack.c.b16 %v448, %v447
      %v506 = vpack.c.b16 %v450, %v449
      %v507 = vpack.c.b16 %v452, %v451
      %v508 = vpack.c.b16 %v454, %v453
      %v509 = vpack.c.b16 %v456, %v455
      %v510 = vpack.c.b16 %v458, %v457
      %v511 = vpack.c.b16 %v460, %v459
      %v512 = vpack.c.b16 %v462, %v461
      %v513 = vpack.c.b16 %v464, %v463
      %v514 = vpack.c.b16 %v466, %v465
      %v515 = vpack.c.b16 %v468, %v467
      %v516 = vpack.c.b16 %v470, %v469
      %v517 = vpack.c.b16 %v472, %v471
      %v518 = vpack.c.b16 %v474, %v473
      %v519 = vpack.c.b16 %v476, %v475
      %v520 = vpack.c.b16 %v478, %v477
      %v521 = vpack.c.b16 %v480, %v479
      %v522 = vpack.c.b16 %v482, %v481
      %v523 = vpack.c.b16 %v484, %v483
      %v524 = vpack.c.b16 %v486, %v485
      %v525 = vpack.c.b16 %v488, %v487
      %v526 = vpack.c.b16 %v490, %v489
      %vm563 = vcmask 523264
      %v565 = vsel %vm563, %v315, 0
      %v568 = vsel %vm563, %v320, 0
      %v571 = vsel %vm563, %v325, 0
      %v574 = vsel %vm563, %v330, 0
      %576 = vmatpush.bf16.msra.mxu0 %v498
      %577 = vmatpush.bf16.msra.mxu0 %v497
      %578 = vmatpush.bf16.msra.mxu0 %v496
      %579 = vmatpush.bf16.msra.mxu0 %v495
      %580 = vmatpush.bf16.msra.mxu0 %v494
      %581 = vmatpush.bf16.msra.mxu0 %v493
      %582 = vmatpush.bf16.msra.mxu0 %v492
      %583 = vmatpush.bf16.msra.mxu0 %v491
      %584 = vmatmul.bf16.gmra.mxu0 %v311
      %v585 = vpop.f32.mrf.mxu0
      %v586 = vadd.f32 0.0, %v585
      %v587 = vpop.f32.mrf.mxu0
      %v588 = vadd.f32 0.0, %v587
      %589 = vmatmul.bf16.gmra.mxu0 %v316
      %v590 = vpop.f32.mrf.mxu0
      %v591 = vadd.f32 0.0, %v590
      %v592 = vpop.f32.mrf.mxu0
      %v593 = vadd.f32 0.0, %v592
      %594 = vmatmul.bf16.gmra.mxu0 %v321
      %v595 = vpop.f32.mrf.mxu0
      %v596 = vadd.f32 0.0, %v595
      %v597 = vpop.f32.mrf.mxu0
      %v598 = vadd.f32 0.0, %v597
      %599 = vmatmul.bf16.gmra.mxu0 %v326
      %v600 = vpop.f32.mrf.mxu0
      %v601 = vadd.f32 0.0, %v600
      %v602 = vpop.f32.mrf.mxu0
      %v603 = vadd.f32 0.0, %v602
      %604 = vdwg.mxu0
      %605 = vmatpush.bf16.msra.mxu0 %v506
      %606 = vmatpush.bf16.msra.mxu0 %v505
      %607 = vmatpush.bf16.msra.mxu0 %v504
      %608 = vmatpush.bf16.msra.mxu0 %v503
      %609 = vmatpush.bf16.msra.mxu0 %v502
      %610 = vmatpush.bf16.msra.mxu0 %v501
      %611 = vmatpush.bf16.msra.mxu0 %v500
      %612 = vmatpush.bf16.msra.mxu0 %v499
      %613 = vmatmul.bf16.gmra.mxu0 %v312
      %v614 = vpop.f32.mrf.mxu0
      %v615 = vadd.f32 %v586, %v614
      %v616 = vpop.f32.mrf.mxu0
      %v617 = vadd.f32 %v588, %v616
      %618 = vmatmul.bf16.gmra.mxu0 %v317
      %v619 = vpop.f32.mrf.mxu0
      %v620 = vadd.f32 %v591, %v619
      %v621 = vpop.f32.mrf.mxu0
      %v622 = vadd.f32 %v593, %v621
      %623 = vmatmul.bf16.gmra.mxu0 %v322
      %v624 = vpop.f32.mrf.mxu0
      %v625 = vadd.f32 %v596, %v624
      %v626 = vpop.f32.mrf.mxu0
      %v627 = vadd.f32 %v598, %v626
      %628 = vmatmul.bf16.gmra.mxu0 %v327
      %v629 = vpop.f32.mrf.mxu0
      %v630 = vadd.f32 %v601, %v629
      %v631 = vpop.f32.mrf.mxu0
      %v632 = vadd.f32 %v603, %v631
      %633 = vdwg.mxu0
      %634 = vmatpush.bf16.msra.mxu0 %v514
      %635 = vmatpush.bf16.msra.mxu0 %v513
      %636 = vmatpush.bf16.msra.mxu0 %v512
      %637 = vmatpush.bf16.msra.mxu0 %v511
      %638 = vmatpush.bf16.msra.mxu0 %v510
      %639 = vmatpush.bf16.msra.mxu0 %v509
      %640 = vmatpush.bf16.msra.mxu0 %v508
      %641 = vmatpush.bf16.msra.mxu0 %v507
      %642 = vmatmul.bf16.gmra.mxu0 %v313
      %v643 = vpop.f32.mrf.mxu0
      %v644 = vadd.f32 %v615, %v643
      %v645 = vpop.f32.mrf.mxu0
      %v646 = vadd.f32 %v617, %v645
      %647 = vmatmul.bf16.gmra.mxu0 %v318
      %v648 = vpop.f32.mrf.mxu0
      %v649 = vadd.f32 %v620, %v648
      %v650 = vpop.f32.mrf.mxu0
      %v651 = vadd.f32 %v622, %v650
      %652 = vmatmul.bf16.gmra.mxu0 %v323
      %v653 = vpop.f32.mrf.mxu0
      %v654 = vadd.f32 %v625, %v653
      %v655 = vpop.f32.mrf.mxu0
      %v656 = vadd.f32 %v627, %v655
      %657 = vmatmul.bf16.gmra.mxu0 %v328
      %v658 = vpop.f32.mrf.mxu0
      %v659 = vadd.f32 %v630, %v658
      %v660 = vpop.f32.mrf.mxu0
      %v661 = vadd.f32 %v632, %v660
      %662 = vdwg.mxu0
      %663 = vmatpush.bf16.msra.mxu0 %v522
      %664 = vmatpush.bf16.msra.mxu0 %v521
      %665 = vmatpush.bf16.msra.mxu0 %v520
      %666 = vmatpush.bf16.msra.mxu0 %v519
      %667 = vmatpush.bf16.msra.mxu0 %v518
      %668 = vmatpush.bf16.msra.mxu0 %v517
      %669 = vmatpush.bf16.msra.mxu0 %v516
      %670 = vmatpush.bf16.msra.mxu0 %v515
      %671 = vmatmul.bf16.gmra.mxu0 %v314
      %v672 = vpop.f32.mrf.mxu0
      %v673 = vadd.f32 %v644, %v672
      %v674 = vpop.f32.mrf.mxu0
      %v675 = vadd.f32 %v646, %v674
      %676 = vmatmul.bf16.gmra.mxu0 %v319
      %v677 = vpop.f32.mrf.mxu0
      %v678 = vadd.f32 %v649, %v677
      %v679 = vpop.f32.mrf.mxu0
      %v680 = vadd.f32 %v651, %v679
      %681 = vmatmul.bf16.gmra.mxu0 %v324
      %v682 = vpop.f32.mrf.mxu0
      %v683 = vadd.f32 %v654, %v682
      %v684 = vpop.f32.mrf.mxu0
      %v685 = vadd.f32 %v656, %v684
      %686 = vmatmul.bf16.gmra.mxu0 %v329
      %v687 = vpop.f32.mrf.mxu0
      %v688 = vadd.f32 %v659, %v687
      %v689 = vpop.f32.mrf.mxu0
      %v690 = vadd.f32 %v661, %v689
      %691 = vdwg.mxu0
      %692 = vmatpush.bf16.msra.mxu0 0
      %693 = vmatpush.bf16.msra.mxu0 0
      %694 = vmatpush.bf16.msra.mxu0 0
      %695 = vmatpush.bf16.msra.mxu0 0
      %696 = vmatpush.bf16.msra.mxu0 %v526
      %697 = vmatpush.bf16.msra.mxu0 %v525
      %698 = vmatpush.bf16.msra.mxu0 %v524
      %699 = vmatpush.bf16.msra.mxu0 %v523
      %700 = vmatmul.bf16.gmra.mxu0 %v565
      %v701 = vpop.f32.mrf.mxu0
      %v702 = vadd.f32 %v673, %v701
      %v703 = vpop.f32.mrf.mxu0
      %v704 = vadd.f32 %v675, %v703
      %705 = vmatmul.bf16.gmra.mxu0 %v568
      %v706 = vpop.f32.mrf.mxu0
      %v707 = vadd.f32 %v678, %v706
      %v708 = vpop.f32.mrf.mxu0
      %v709 = vadd.f32 %v680, %v708
      %710 = vmatmul.bf16.gmra.mxu0 %v571
      %v711 = vpop.f32.mrf.mxu0
      %v712 = vadd.f32 %v683, %v711
      %v713 = vpop.f32.mrf.mxu0
      %v714 = vadd.f32 %v685, %v713
      %715 = vmatmul.bf16.gmra.mxu0 %v574
      %v716 = vpop.f32.mrf.mxu0
      %v717 = vadd.f32 %v688, %v716
      %v718 = vpop.f32.mrf.mxu0
      %v719 = vadd.f32 %v690, %v718
      %720 = vdwg.mxu0
      %v721 = vpack.c.bf16 %v702, %v702
      %v722 = vpack.c.bf16 %v704, %v704
      %v723 = vpack.c.bf16 %v707, %v707
      %v724 = vpack.c.bf16 %v709, %v709
      %v725 = vpack.c.bf16 %v712, %v712
      %v726 = vpack.c.bf16 %v714, %v714
      %v727 = vpack.c.bf16 %v717, %v717
      %v728 = vpack.c.bf16 %v719, %v719
      %729 = vst [vmem:[%s148] sm:$0xf] %v721
      %730 = vst [vmem:[%s148 + $0x4] sm:$0xf] %v722
      %731 = vst [vmem:[%s148 + $0x8] sm:$0xf] %v723
      %732 = vst [vmem:[%s148 + $0xc] sm:$0xf] %v724
      %733 = vst [vmem:[%s148 + $0x10] sm:$0xf] %v725
      %734 = vst [vmem:[%s148 + $0x14] sm:$0xf] %v726
      %735 = vst [vmem:[%s148 + $0x18] sm:$0xf] %v727
      %736 = vst [vmem:[%s148 + $0x1c] sm:$0xf] %v728
      %s737 = smul.u32 8, %s13
      %p738 = scmp.lt.s32.totalorder %s737, 15
      %s739 = scalar_select %p738, %s737, 15
      %s740 = smul.addr %s739, 4
      %s741 = scalar_lea.vmem %s2, %s740
      // Predicated region
      $region29: #{simple_net_forward.1} parent=27 // pred_check
        %p742 = pneg %p78
      $region30: #{simple_net_forward.1} parent=27 // pred_check_branch
        %744 = sbr.rel (%p742) target = $region32
      $region31: #{simple_net_forward.1} parent=27 // pred_region
        %s745 = smul.u32 8, %s13
      $region32: #{simple_net_forward.1} parent=27 // pred_fallthru
        _
    $region28: #{simple_net_forward.1} parent=5 // pred_fallthru
      _
    %p746 = scmp.le.s32.totalorder 2, %s8
    // Predicated region
    $region33: #{simple_net_forward.1} parent=5 // pred_check
      %p747 = pneg %p746
    $region34: #{simple_net_forward.1} parent=5 // pred_check_branch
      %749 = sbr.rel (%p747) target = $region36
    $region35: #{simple_net_forward.1} parent=5 // pred_region
      %s750 = ssub.s32 %s8, 2
      // Predicated region
      $region37: #{simple_net_forward.1} parent=35 // pred_check
        %p751 = pneg %p84
      $region38: #{simple_net_forward.1} parent=35 // pred_check_branch
        %753 = sbr.rel (%p751) target = $region40
      $region39: #{simple_net_forward.1} parent=35 // pred_region
        %s754 = smul.u32 8, %s14
        %p755 = scmp.lt.s32.totalorder %s754, 15
        %s756 = scalar_select %p755, %s754, 15
        %s757 = smul.addr %s756, 4
        %s758 = scalar_lea.vmem %s2, %s757
      $region40: #{simple_net_forward.1} parent=35 // pred_fallthru
        _
    $region36: #{simple_net_forward.1} parent=5 // pred_fallthru
      _
  $region6: #{simple_net_forward.1} parent=0 // loop_footer
    %s12 = sadd.s32 1, %s8
  $region7: #{simple_net_forward.1} parent=0 // loop_footer_branch
    %7 = sbr.rel target = $region3
  $region8: #{simple_net_forward.1} parent=0 // loop_exit
    _

</llo_original>
